<compile_context>
chip_gen: v6e
topology: v6e:2x2x1
jax: 0.10.0
libtpu: 0.0.40
codegen_flags: <defaults>
</compile_context>

<pallas_src>
import math
import jax
import jax.numpy as jnp
from jax.experimental import pallas as pl
from jax.experimental.pallas import tpu as pltpu

_INV_SQRT2 = 1.0 / math.sqrt(2.0)


def _round_up(a, b):
    return ((a + b - 1) // b) * b


def _gelu_exact(h):
    # Exact (erf-based) GELU, matching torch.nn.GELU() default.
    return 0.5 * h * (1.0 + jax.lax.erf(h * _INV_SQRT2))


def _ffn_step(x_ref, w1_ref, b1_ref, w2_ref):
    """One (tile_m, tile_k) slice of gelu(x @ W1 + b1) @ W2, f32 partials."""
    h = jnp.dot(x_ref[...], w1_ref[0], preferred_element_type=jnp.float32)
    h = _gelu_exact(h + b1_ref[...])
    # TODO(synk): dropout is identity in eval/inference; train-mode dropout
    #             (pltpu.prng_seed + stateful_bernoulli) not implemented.
    return jnp.dot(h.astype(w2_ref.dtype), w2_ref[...],
                   preferred_element_type=jnp.float32)


def _ffn_kernel_accum_in_out(x_ref, w1_ref, b1_ref, w2_ref, b2_ref, o_ref):
    """f32 output: accumulate straight into the resident output tile."""
    k = pl.program_id(1)

    @pl.when(k == 0)
    def _():
        o_ref[...] = jnp.zeros_like(o_ref)

    o_ref[...] += _ffn_step(x_ref, w1_ref, b1_ref, w2_ref)

    @pl.when(k == pl.num_programs(1) - 1)
    def _():
        o_ref[...] += b2_ref[...]


def _ffn_kernel_scratch_acc(x_ref, w1_ref, b1_ref, w2_ref, b2_ref, o_ref, acc_ref):
    """Non-f32 output: f32 VMEM scratch accumulator + cast on finalize."""
    k = pl.program_id(1)

    @pl.when(k == 0)
    def _():
        acc_ref[...] = jnp.zeros_like(acc_ref)

    acc_ref[...] += _ffn_step(x_ref, w1_ref, b1_ref, w2_ref)

    @pl.when(k == pl.num_programs(1) - 1)
    def _():
        o_ref[...] = (acc_ref[...] + b2_ref[...]).astype(o_ref.dtype)


def _vmem_capacity_bytes():
    try:
        info = pltpu.get_tpu_info()
        cap = getattr(info, "vmem_capacity_bytes", None)
        if cap:
            return int(cap)
    except Exception:
        pass
    return 64 * 1024 * 1024  # conservative: v7x per-TensorCore VMEM


def _pick_tiles(M, hidden, inter, cdt_size, out_size, needs_acc, sublane, vmem_cap):
    """Largest (tile_m, tile_k) whose double-buffered working set fits ~70% VMEM."""
    budget = int(vmem_cap * 0.70)

    tm_max = _round_up(M, sublane)
    if vmem_cap <= 64 * 1024 * 1024:
        # 2-TensorCore chips (v7x-class): keep >= 2 M-tiles so both cores work.
        tm_max = min(tm_max, max(sublane, _round_up((M + 1) // 2, sublane)))

    tm_cands = sorted(
        {min(t, tm_max) for t in (1024, 512, 384, 256, 128, 64, 32, 16, 8)
         if t % sublane == 0} | {tm_max},
        reverse=True)
    # tile_k candidates are multiples of 128 or the full intermediate dim, so
    # the (1, tile_k) bias block always satisfies the lane-tiling constraint.
    tk_cands = sorted({min(t, inter) for t in (512, 256, 128)}, reverse=True)

    def working_set(tm, tk):
        b = 2 * (tm * hidden * cdt_size        # x (double-buffered)
                 + hidden * tk * cdt_size      # W1 tile
                 + tk * hidden * cdt_size      # W2 tile
                 + 4 * (tk + hidden)           # biases (f32)
                 + tm * hidden * out_size)     # output tile
        if needs_acc:
            b += tm * hidden * 4               # f32 accumulator scratch
        return b

    for tm in tm_cands:
        for tk in tk_cands:
            if working_set(tm, tk) <= budget:
                return tm, tk
    return tm_cands[-1], tk_cands[-1]


def feed_forward_network(x, w1, b1, w2, b2, *, compute_dtype=jnp.bfloat16,
                         tile_m=None, tile_k=None, vmem_limit_bytes=None):
    """
    x  : [batch, seq, hidden]
    w1 : [hidden, intermediate]   (transposed PyTorch dense1.weight)
    b1 : [intermediate]
    w2 : [intermediate, hidden]   (transposed PyTorch dense2.weight)
    b2 : [hidden]
    returns [batch, seq, hidden]  (dtype of x)
    """
    batch, seq, hidden = x.shape
    inter = w1.shape[1]
    M = batch * seq
    out_dtype = x.dtype

    cdt = jnp.dtype(compute_dtype) if compute_dtype is not None else x.dtype
    cdt_size = cdt.itemsize
    out_size = jnp.dtype(out_dtype).itemsize
    sublane = 16 if cdt == jnp.bfloat16 else 8

    accumulate_in_out = (out_dtype == jnp.float32)
    vmem_cap = _vmem_capacity_bytes()

    if tile_m is None or tile_k is None:
        tm_auto, tk_auto = _pick_tiles(M, hidden, inter, cdt_size, out_size,
                                       not accumulate_in_out, sublane, vmem_cap)
        tile_m = tm_auto if tile_m is None else tile_m
        tile_k = tk_auto if tile_k is None else tile_k
    tile_m = min(tile_m, _round_up(M, sublane))
    tile_k = min(tile_k, inter)

    if vmem_limit_bytes is None:
        vmem_limit_bytes = int(vmem_cap * 7 // 8)   # ~112 MiB on v5e/v6e, ~56 MiB on v7x

    m_pad = _round_up(M, tile_m)
    k_pad = _round_up(inter, tile_k)
    num_m = m_pad // tile_m
    num_k = k_pad // tile_k

    # ---- host-side layout prep ------------------------------------------
    x2d = x.reshape(M, hidden).astype(cdt)
    if m_pad != M:
        x2d = jnp.pad(x2d, ((0, m_pad - M), (0, 0)))

    w1c = w1.astype(cdt)
    b1_2d = b1.reshape(1, inter).astype(jnp.float32)
    w2c = w2.astype(cdt)
    b2_2d = b2.reshape(1, hidden).astype(jnp.float32)
    if k_pad != inter:
        # zero-padded W1 cols / b1 / W2 rows contribute exactly zero
        w1c = jnp.pad(w1c, ((0, 0), (0, k_pad - inter)))
        b1_2d = jnp.pad(b1_2d, ((0, 0), (0, k_pad - inter)))
        w2c = jnp.pad(w2c, ((0, k_pad - inter), (0, 0)))

    # Pre-block W1 into contiguous (num_k, hidden, tile_k) tiles so the per-k
    # W1 DMA is contiguous (a raw column slice would be strided by `inter`).
    w1_blk = w1c.reshape(hidden, num_k, tile_k).transpose(1, 0, 2)

    # ---- advisory cost estimate (includes num_m-fold weight re-streaming) --
    cost = pl.CostEstimate(
        flops=4 * m_pad * hidden * k_pad,
        transcendentals=m_pad * k_pad,
        bytes_accessed=int(m_pad * hidden * cdt_size                 # x
                           + num_m * hidden * k_pad * cdt_size       # W1 (re-read / m-tile)
                           + num_m * k_pad * hidden * cdt_size       # W2 (re-read / m-tile)
                           + num_m * num_k * 4 * (tile_k + hidden)   # biases
                           + m_pad * hidden * out_size))             # out

    in_specs = [
        pl.BlockSpec((tile_m, hidden), lambda i, k: (i, 0)),         # x tile (held across k)
        pl.BlockSpec((1, hidden, tile_k), lambda i, k: (k, 0, 0)),   # pre-blocked W1 tile
        pl.BlockSpec((1, tile_k), lambda i, k: (0, k)),              # b1 tile
        pl.BlockSpec((tile_k, hidden), lambda i, k: (k, 0)),         # W2 row tile
        pl.BlockSpec((1, hidden), lambda i, k: (0, 0)),              # b2 (constant)
    ]
    out_spec = pl.BlockSpec((tile_m, hidden), lambda i, k: (i, 0))

    if accumulate_in_out:
        kernel = _ffn_kernel_accum_in_out
        scratch = []
    else:
        kernel = _ffn_kernel_scratch_acc
        scratch = [pltpu.VMEM((tile_m, hidden), jnp.float32)]

    out2d = pl.pallas_call(
        kernel,
        out_shape=jax.ShapeDtypeStruct((m_pad, hidden), out_dtype),
        grid_spec=pltpu.PrefetchScalarGridSpec(
            num_scalar_prefetch=0,
            grid=(num_m, num_k),                      # reduction axis last
            in_specs=in_specs,
            out_specs=out_spec,
            scratch_shapes=scratch),
        compiler_params=pltpu.CompilerParams(
            dimension_semantics=("parallel", "arbitrary"),
            vmem_limit_bytes=vmem_limit_bytes),
        cost_estimate=cost,
    )(x2d, w1_blk, b1_2d, w2c, b2_2d)

    return out2d[:M].reshape(batch, seq, hidden)


def _reference(x, w1, b1, w2, b2):
    h = x @ w1 + b1
    h = 0.5 * h * (1.0 + jax.lax.erf(h / math.sqrt(2.0)))
    return h @ w2 + b2


if __name__ == "__main__":
    # Small shapes consistent with the module: batch=2, seq=8, hidden=32, inter=64.
    batch, seq, hidden, inter = 2, 8, 32, 64
    key = jax.random.PRNGKey(0)
    kx, k1, kb1, k2, kb2 = jax.random.split(key, 5)

    bound1 = 1.0 / math.sqrt(hidden)
    bound2 = 1.0 / math.sqrt(inter)
    x = jax.random.normal(kx, (batch, seq, hidden), dtype=jnp.float32)
    w1 = jax.random.uniform(k1, (hidden, inter), jnp.float32, -bound1, bound1)
    b1 = jax.random.uniform(kb1, (inter,),       jnp.float32, -bound1, bound1)
    w2 = jax.random.uniform(k2, (inter, hidden), jnp.float32, -bound2, bound2)
    b2 = jax.random.uniform(kb2, (hidden,),      jnp.float32, -bound2, bound2)

    ref = _reference(x.reshape(-1, hidden), w1, b1, w2, b2).reshape(batch, seq, hidden)

    # f32 debug/reference compute path: bit-tight vs the f32 reference.
    out_f32 = feed_forward_network(x, w1, b1, w2, b2, compute_dtype=jnp.float32)
    out_f32 = jax.block_until_ready(out_f32)
    assert jnp.allclose(out_f32, ref, atol=1e-5, rtol=1e-5), "f32 path mismatch"

    # Default bf16 compute (f32 accumulation): looser tolerance vs f32 reference.
    out_bf16 = feed_forward_network(x, w1, b1, w2, b2)
    out_bf16 = jax.block_until_ready(out_bf16)
    assert jnp.allclose(out_bf16, ref, atol=5e-2, rtol=5e-2), "bf16 path mismatch"

    print("KERNEL_OK")
</pallas_src>

<mosaic_0001>
module attributes {stable_mosaic.version = 11 : i64} {
  func.func @_ffn_kernel_accum_in_out(%arg0: i32, %arg1: i32, %arg2: memref<8x32xf32, #tpu.memory_space<vmem>>, %arg3: memref<1x32x64xf32, #tpu.memory_space<vmem>>, %arg4: memref<1x64xf32, #tpu.memory_space<vmem>>, %arg5: memref<64x32xf32, #tpu.memory_space<vmem>>, %arg6: memref<1x32xf32, #tpu.memory_space<vmem>>, %arg7: memref<8x32xf32, #tpu.memory_space<vmem>>) attributes {dimension_semantics = [#tpu.dimension_semantics<parallel>, #tpu.dimension_semantics<arbitrary>], iteration_bounds = array<i64: 2, 1>, scalar_prefetch = 0 : i64, scratch_operands = 0 : i64, tpu.core_type = #tpu.core_type<tc>, window_params = [{transform_indices = @transform_0, window_bounds = array<i64: 8, 32>}, {transform_indices = @transform_1, window_bounds = array<i64: 1, 32, 64>}, {transform_indices = @transform_2, window_bounds = array<i64: 1, 64>}, {transform_indices = @transform_3, window_bounds = array<i64: 64, 32>}, {pipeline_mode = #tpu.pipeline_mode<synchronous>, transform_indices = @transform_4, window_bounds = array<i64: 1, 32>}, {transform_indices = @transform_5, window_bounds = array<i64: 8, 32>}]} {
    %c0_i32 = arith.constant 0 : i32
    %0 = arith.cmpi eq, %arg1, %c0_i32 : i32
    %1 = arith.extui %0 : i1 to i32
    %c0_i32_0 = arith.constant 0 : i32
    %2 = arith.cmpi ne, %1, %c0_i32_0 : i32
    scf.if %2 {
      %cst_19 = arith.constant 0.000000e+00 : f32
      %26 = vector.broadcast %cst_19 : f32 to vector<8x32xf32>
      %c0_20 = arith.constant 0 : index
      %c0_21 = arith.constant 0 : index
      %27 = vector.load %arg7[%c0_20, %c0_21] : memref<8x32xf32, #tpu.memory_space<vmem>>, vector<8x32xf32>
      tpu.vector_store %arg7[%c0_20, %c0_21], %26 {strides = array<i32>} : memref<8x32xf32, #tpu.memory_space<vmem>>, vector<8x32xf32>,
    } else {
    }
    %c0 = arith.constant 0 : index
    %c0_1 = arith.constant 0 : index
    %3 = vector.load %arg7[%c0, %c0_1] : memref<8x32xf32, #tpu.memory_space<vmem>>, vector<8x32xf32>
    %c0_2 = arith.constant 0 : index
    %c0_3 = arith.constant 0 : index
    %4 = vector.load %arg2[%c0_2, %c0_3] : memref<8x32xf32, #tpu.memory_space<vmem>>, vector<8x32xf32>
    %c0_4 = arith.constant 0 : index
    %c0_5 = arith.constant 0 : index
    %c0_6 = arith.constant 0 : index
    %5 = vector.load %arg3[%c0_4, %c0_5, %c0_6] : memref<1x32x64xf32, #tpu.memory_space<vmem>>, vector<1x32x64xf32>
    %6 = vector.shape_cast %5 : vector<1x32x64xf32> to vector<32x64xf32>
    %cst = arith.constant dense<0.000000e+00> : vector<8x64xf32>
    %7 = tpu.matmul %4, %6, %cst {dimension_numbers = #tpu.dot_dimension_numbers<[1], [0], [0], [1], [0, 0, 1, 1], [], []>} : vector<8x32xf32>, vector<32x64xf32>, vector<8x64xf32> -> vector<8x64xf32>
    %c0_7 = arith.constant 0 : index
    %c0_8 = arith.constant 0 : index
    %8 = vector.load %arg4[%c0_7, %c0_8] : memref<1x64xf32, #tpu.memory_space<vmem>>, vector<1x64xf32>
    %9 = vector.broadcast %8 : vector<1x64xf32> to vector<8x64xf32>
    %10 = arith.addf %7, %9 : vector<8x64xf32>
    %cst_9 = arith.constant 5.000000e-01 : f32
    %11 = vector.broadcast %cst_9 : f32 to vector<8x64xf32>
    %12 = arith.mulf %11, %10 : vector<8x64xf32>
    %cst_10 = arith.constant 0.707106769 : f32
    %13 = vector.broadcast %cst_10 : f32 to vector<8x64xf32>
    %14 = arith.mulf %10, %13 : vector<8x64xf32>
    %15 = math.erf %14 : vector<8x64xf32>
    %cst_11 = arith.constant 1.000000e+00 : f32
    %16 = vector.broadcast %cst_11 : f32 to vector<8x64xf32>
    %17 = arith.addf %16, %15 : vector<8x64xf32>
    %18 = arith.mulf %12, %17 : vector<8x64xf32>
    %c0_12 = arith.constant 0 : index
    %c0_13 = arith.constant 0 : index
    %19 = vector.load %arg5[%c0_12, %c0_13] : memref<64x32xf32, #tpu.memory_space<vmem>>, vector<64x32xf32>
    %cst_14 = arith.constant dense<0.000000e+00> : vector<8x32xf32>
    %20 = tpu.matmul %18, %19, %cst_14 {dimension_numbers = #tpu.dot_dimension_numbers<[1], [0], [0], [1], [0, 0, 1, 1], [], []>} : vector<8x64xf32>, vector<64x32xf32>, vector<8x32xf32> -> vector<8x32xf32>
    %21 = arith.addf %3, %20 : vector<8x32xf32>
    %c0_15 = arith.constant 0 : index
    %c0_16 = arith.constant 0 : index
    %22 = vector.load %arg7[%c0_15, %c0_16] : memref<8x32xf32, #tpu.memory_space<vmem>>, vector<8x32xf32>
    tpu.vector_store %arg7[%c0_15, %c0_16], %21 {strides = array<i32>} : memref<8x32xf32, #tpu.memory_space<vmem>>, vector<8x32xf32>,
    %c0_i32_17 = arith.constant 0 : i32
    %23 = arith.cmpi eq, %arg1, %c0_i32_17 : i32
    %24 = arith.extui %23 : i1 to i32
    %c0_i32_18 = arith.constant 0 : i32
    %25 = arith.cmpi ne, %24, %c0_i32_18 : i32
    scf.if %25 {
      %c0_19 = arith.constant 0 : index
      %c0_20 = arith.constant 0 : index
      %26 = vector.load %arg7[%c0_19, %c0_20] : memref<8x32xf32, #tpu.memory_space<vmem>>, vector<8x32xf32>
      %c0_21 = arith.constant 0 : index
      %c0_22 = arith.constant 0 : index
      %27 = vector.load %arg6[%c0_21, %c0_22] : memref<1x32xf32, #tpu.memory_space<vmem>>, vector<1x32xf32>
      %28 = vector.broadcast %27 : vector<1x32xf32> to vector<8x32xf32>
      %29 = arith.addf %26, %28 : vector<8x32xf32>
      %c0_23 = arith.constant 0 : index
      %c0_24 = arith.constant 0 : index
      %30 = vector.load %arg7[%c0_23, %c0_24] : memref<8x32xf32, #tpu.memory_space<vmem>>, vector<8x32xf32>
      tpu.vector_store %arg7[%c0_23, %c0_24], %29 {strides = array<i32>} : memref<8x32xf32, #tpu.memory_space<vmem>>, vector<8x32xf32>,
    } else {
    }
    return
  }
  func.func @transform_0(%arg0: i32, %arg1: i32) -> (i32, i32) {
    %c0_i32 = arith.constant 0 : i32
    %c0_i32_0 = arith.constant 0 : i32
    return %arg0, %c0_i32 : i32, i32
  }
  func.func @transform_1(%arg0: i32, %arg1: i32) -> (i32, i32, i32) {
    %c0_i32 = arith.constant 0 : i32
    %c0_i32_0 = arith.constant 0 : i32
    %c0_i32_1 = arith.constant 0 : i32
    return %arg1, %c0_i32, %c0_i32_0 : i32, i32, i32
  }
  func.func @transform_2(%arg0: i32, %arg1: i32) -> (i32, i32) {
    %c0_i32 = arith.constant 0 : i32
    %c0_i32_0 = arith.constant 0 : i32
    return %c0_i32, %arg1 : i32, i32
  }
  func.func @transform_3(%arg0: i32, %arg1: i32) -> (i32, i32) {
    %c0_i32 = arith.constant 0 : i32
    %c0_i32_0 = arith.constant 0 : i32
    return %arg1, %c0_i32 : i32, i32
  }
  func.func @transform_4(%arg0: i32, %arg1: i32) -> (i32, i32) {
    %c0_i32 = arith.constant 0 : i32
    %c0_i32_0 = arith.constant 0 : i32
    %c0_i32_1 = arith.constant 0 : i32
    return %c0_i32, %c0_i32_0 : i32, i32
  }
  func.func @transform_5(%arg0: i32, %arg1: i32) -> (i32, i32) {
    %c0_i32 = arith.constant 0 : i32
    %c0_i32_0 = arith.constant 0 : i32
    return %arg0, %c0_i32 : i32, i32
  }
}

</mosaic_0001>

<llo_original>
// kernel: tpu_custom_call.1
$region0: #{tpu_custom_call.1}
  #allocation0 [shape = 'u32[]', space=smem, size = 0x4, offset = 0x4, fixed_abs, tag = 'smem constant byte address 0x4 - core index']
  #allocation1 [shape = 'u32[144,128]{1,0:T(1,128)}', space=vmem, size = 0x12000, scoped, tag = 'internal scratch']
  %s0 = inlined_call_operand.vmem [shape: f32[16,32], index: 0, kind: input, shape index: {}]
  %s1 = inlined_call_operand.vmem [shape: f32[1,32,64], index: 1, kind: input, shape index: {}]
  %s2 = inlined_call_operand.vmem [shape: f32[1,64], index: 2, kind: input, shape index: {}]
  %s3 = inlined_call_operand.vmem [shape: f32[64,32], index: 3, kind: input, shape index: {}]
  %s4 = inlined_call_operand.vmem [shape: f32[1,32], index: 4, kind: input, shape index: {}]
  %s5 = inlined_call_operand.hbm [shape: f32[16,32], index: 5, kind: output, shape index: {}]
  %s6 = sld [smem:[#allocation0]]
  $region61: #{tpu_custom_call.1} parent=0
    _
  %s8 = ssub.s32 1, %s6
  %s9 = scalar_select 0, %s8, %s6
  $region1: #{tpu_custom_call.1} parent=0
    #allocation2 [shape = 'u8[8192]{0}', space=vmem, size = 0x2000, scoped, tag = 'output window, operand 0']
    #allocation3 [shape = 's32[2]{0}', space=sflag, size = 0x8, scoped, tag = 'scoped memory for tpu_custom_call.1']
    %10 = vsyncpa [#allocation3], 0
    %s11 = scalar_lea.sflag [#allocation3], 1
    %12 = vsyncpa %s11, 0
    loop: start=0, step=1, limit=4
    $region2: #{tpu_custom_call.1} parent=1 // loop_pre_header
      _
    $region3: #{tpu_custom_call.1} parent=1 // loop_header
      %s14 = sphi 0, %s18
      %p15 = scmp.ge.s32.totalorder %s14, 4
      %s21 = sphi 0, %s33
      %s22 = sphi 0, %s29
      %s23 = sphi 0, %s21
      %s24 = sphi 0, %s22
      %s25 = sphi 0, %s23
      %s26 = sphi 0, %s24
      %s36 = sphi 0, %s38
      %s39 = sphi 0, %s36
      %s40 = sphi 0, %s39
      %s56 = sphi 0, %s40
      %s62 = sphi 0, %s64
      %s65 = sphi 0, %s62
      %s66 = sphi 0, %s65
      %s82 = sphi 0, %s66
      %s88 = sphi 0, %s90
      %s91 = sphi 0, %s88
      %s92 = sphi 0, %s91
      %s108 = sphi 0, %s92
      %s114 = sphi 0, %s116
      %s117 = sphi 0, %s114
      %s118 = sphi 0, %s117
      %s134 = sphi 0, %s118
      %s138 = sphi 0, %s138
      %s140 = sphi 0, %s138
      %s141 = sphi 0, %s140
      %s155 = sphi 0, %s141
      %s161 = sphi 0, %s163
      %s164 = sphi 0, %s161
      %s165 = sphi 0, %s164
      %s181 = sphi 0, %s165
    $region4: #{tpu_custom_call.1} parent=1 // loop_header_branch
      %17 = sbr.rel (%p15) target = $region8
    $region5: #{tpu_custom_call.1} parent=1 // loop_body
      %s19 = ssub.s32 %s14, 1
      %s20 = ssub.s32 %s14, 2
      %s27 = sadd.s32 1, %s22
      %p28 = scmp.ge.s32.totalorder %s27, 1
      %s29 = scalar_select %p28, 0, %s27
      %s30 = sadd.s32 1, %s21
      %s31 = scalar_select %p28, %s30, %s21
      %p32 = scmp.ge.s32.totalorder %s31, 2
      %s33 = scalar_select %p32, 0, %s31
      %s34 = ssub.s32 %s21, %s33
      %p35 = scmp.eq.s32.totalorder %s34, 0
      %s37 = sadd.s32 %s36, 1
      %s38 = scalar_select %p35, %s36, %s37
      %p41 = pneg %p35
      %p42 = scmp.eq.s32.totalorder %s14, 1
      %p43 = por %p41, %p42
      %p44 = scmp.ne.s32.totalorder %s36, %s39
      %p45 = scmp.eq.s32.totalorder %s14, 0
      %p46 = por %p44, %p45
      %p47 = scmp.ne.s32.totalorder %s36, %s39
      %p48 = scmp.eq.s32.totalorder %s19, 1
      %p49 = por %p47, %p48
      %p50 = scmp.ne.s32.totalorder %s39, %s40
      %p51 = scmp.eq.s32.totalorder %s19, 0
      %p52 = por %p50, %p51
      %p53 = scmp.ne.s32.totalorder %s39, %s40
      %p54 = scmp.eq.s32.totalorder %s20, 1
      %p55 = por %p53, %p54
      %p57 = scmp.ne.s32.totalorder %s40, %s56
      %p58 = scmp.eq.s32.totalorder %s20, 0
      %p59 = por %p57, %p58
      %s60 = ssub.s32 %s22, %s29
      %p61 = scmp.eq.s32.totalorder %s60, 0
      %s63 = sadd.s32 %s62, 1
      %s64 = scalar_select %p61, %s62, %s63
      %p67 = pneg %p61
      %p68 = scmp.eq.s32.totalorder %s14, 1
      %p69 = por %p67, %p68
      %p70 = scmp.ne.s32.totalorder %s62, %s65
      %p71 = scmp.eq.s32.totalorder %s14, 0
      %p72 = por %p70, %p71
      %p73 = scmp.ne.s32.totalorder %s62, %s65
      %p74 = scmp.eq.s32.totalorder %s19, 1
      %p75 = por %p73, %p74
      %p76 = scmp.ne.s32.totalorder %s65, %s66
      %p77 = scmp.eq.s32.totalorder %s19, 0
      %p78 = por %p76, %p77
      %p79 = scmp.ne.s32.totalorder %s65, %s66
      %p80 = scmp.eq.s32.totalorder %s20, 1
      %p81 = por %p79, %p80
      %p83 = scmp.ne.s32.totalorder %s66, %s82
      %p84 = scmp.eq.s32.totalorder %s20, 0
      %p85 = por %p83, %p84
      %s86 = ssub.s32 %s22, %s29
      %p87 = scmp.eq.s32.totalorder %s86, 0
      %s89 = sadd.s32 %s88, 1
      %s90 = scalar_select %p87, %s88, %s89
      %p93 = pneg %p87
      %p94 = scmp.eq.s32.totalorder %s14, 1
      %p95 = por %p93, %p94
      %p96 = scmp.ne.s32.totalorder %s88, %s91
      %p97 = scmp.eq.s32.totalorder %s14, 0
      %p98 = por %p96, %p97
      %p99 = scmp.ne.s32.totalorder %s88, %s91
      %p100 = scmp.eq.s32.totalorder %s19, 1
      %p101 = por %p99, %p100
      %p102 = scmp.ne.s32.totalorder %s91, %s92
      %p103 = scmp.eq.s32.totalorder %s19, 0
      %p104 = por %p102, %p103
      %p105 = scmp.ne.s32.totalorder %s91, %s92
      %p106 = scmp.eq.s32.totalorder %s20, 1
      %p107 = por %p105, %p106
      %p109 = scmp.ne.s32.totalorder %s92, %s108
      %p110 = scmp.eq.s32.totalorder %s20, 0
      %p111 = por %p109, %p110
      %s112 = ssub.s32 %s22, %s29
      %p113 = scmp.eq.s32.totalorder %s112, 0
      %s115 = sadd.s32 %s114, 1
      %s116 = scalar_select %p113, %s114, %s115
      %p119 = pneg %p113
      %p120 = scmp.eq.s32.totalorder %s14, 1
      %p121 = por %p119, %p120
      %p122 = scmp.ne.s32.totalorder %s114, %s117
      %p123 = scmp.eq.s32.totalorder %s14, 0
      %p124 = por %p122, %p123
      %p125 = scmp.ne.s32.totalorder %s114, %s117
      %p126 = scmp.eq.s32.totalorder %s19, 1
      %p127 = por %p125, %p126
      %p128 = scmp.ne.s32.totalorder %s117, %s118
      %p129 = scmp.eq.s32.totalorder %s19, 0
      %p130 = por %p128, %p129
      %p131 = scmp.ne.s32.totalorder %s117, %s118
      %p132 = scmp.eq.s32.totalorder %s20, 1
      %p133 = por %p131, %p132
      %p135 = scmp.ne.s32.totalorder %s118, %s134
      %p136 = scmp.eq.s32.totalorder %s20, 0
      %p137 = por %p135, %p136
      %s139 = sadd.s32 %s138, 1
      %p142 = scmp.eq.s32.totalorder %s14, 1
      %p143 = scmp.ne.s32.totalorder %s138, %s140
      %p144 = scmp.eq.s32.totalorder %s14, 0
      %p145 = por %p143, %p144
      %p146 = scmp.ne.s32.totalorder %s138, %s140
      %p147 = scmp.eq.s32.totalorder %s19, 1
      %p148 = por %p146, %p147
      %p149 = scmp.ne.s32.totalorder %s140, %s141
      %p150 = scmp.eq.s32.totalorder %s19, 0
      %p151 = por %p149, %p150
      %p152 = scmp.ne.s32.totalorder %s140, %s141
      %p153 = scmp.eq.s32.totalorder %s20, 1
      %p154 = por %p152, %p153
      %p156 = scmp.ne.s32.totalorder %s141, %s155
      %p157 = scmp.eq.s32.totalorder %s20, 0
      %p158 = por %p156, %p157
      %s159 = ssub.s32 %s21, %s33
      %p160 = scmp.eq.s32.totalorder %s159, 0
      %s162 = sadd.s32 %s161, 1
      %s163 = scalar_select %p160, %s161, %s162
      %p166 = pneg %p160
      %p167 = scmp.eq.s32.totalorder %s14, 1
      %p168 = por %p166, %p167
      %p169 = scmp.ne.s32.totalorder %s161, %s164
      %p170 = scmp.eq.s32.totalorder %s14, 0
      %p171 = por %p169, %p170
      %p172 = scmp.ne.s32.totalorder %s161, %s164
      %p173 = scmp.eq.s32.totalorder %s19, 1
      %p174 = por %p172, %p173
      %p175 = scmp.ne.s32.totalorder %s164, %s165
      %p176 = scmp.eq.s32.totalorder %s19, 0
      %p177 = por %p175, %p176
      %p178 = scmp.ne.s32.totalorder %s164, %s165
      %p179 = scmp.eq.s32.totalorder %s20, 1
      %p180 = por %p178, %p179
      %p182 = scmp.ne.s32.totalorder %s165, %s181
      %p183 = scmp.eq.s32.totalorder %s20, 0
      %p184 = por %p182, %p183
      %p185 = scmp.le.s32.totalorder 1, %s14
      %p186 = scmp.lt.s32.totalorder %s14, 3
      %p187 = pnand %p185, %p186
      %p188 = pneg %p187
      // Predicated region
      $region9: #{tpu_custom_call.1} parent=5 // pred_check
        _
      $region10: #{tpu_custom_call.1} parent=5 // pred_check_branch
        %190 = sbr.rel (%p187) target = $region12
      $region11: #{tpu_custom_call.1} parent=5 // pred_region
        %s191 = ssub.s32 %s14, 1
        // Predicated region
        $region13: #{tpu_custom_call.1} parent=11 // pred_check
          %p192 = pneg %p78
        $region14: #{tpu_custom_call.1} parent=11 // pred_check_branch
          %194 = sbr.rel (%p192) target = $region16
        $region15: #{tpu_custom_call.1} parent=11 // pred_region
          %p195 = scmp.lt.s32.totalorder %s24, 0
          %s196 = scalar_select %p195, %s24, 0
          %s197 = smul.addr %s196, 4
          %s198 = smul.addr %s197, 8
          %s199 = scalar_lea.vmem %s1, %s198
        $region16: #{tpu_custom_call.1} parent=11 // pred_fallthru
          _
        // Predicated region
        $region17: #{tpu_custom_call.1} parent=11 // pred_check
          %p200 = pneg %p104
        $region18: #{tpu_custom_call.1} parent=11 // pred_check_branch
          %202 = sbr.rel (%p200) target = $region20
        $region19: #{tpu_custom_call.1} parent=11 // pred_region
          %p203 = scmp.lt.s32.totalorder %s24, 0
          %s204 = scalar_select %p203, %s24, 0
          %s205 = scalar_lea.vmem %s2, %s204
        $region20: #{tpu_custom_call.1} parent=11 // pred_fallthru
          _
        // Predicated region
        $region21: #{tpu_custom_call.1} parent=11 // pred_check
          %p206 = pneg %p130
        $region22: #{tpu_custom_call.1} parent=11 // pred_check_branch
          %208 = sbr.rel (%p206) target = $region24
        $region23: #{tpu_custom_call.1} parent=11 // pred_region
          %s209 = smul.u32 8, %s24
          %p210 = scmp.lt.s32.totalorder %s209, 7
          %s211 = scalar_select %p210, %s209, 7
          %s212 = smul.addr %s211, 8
          %s213 = scalar_lea.vmem %s3, %s212
          %s214 = smul.u32 8, %s24
        $region24: #{tpu_custom_call.1} parent=11 // pred_fallthru
          _
        // Predicated region
        $region25: #{tpu_custom_call.1} parent=11 // pred_check
          %p215 = pneg %p151
        $region26: #{tpu_custom_call.1} parent=11 // pred_check_branch
          %217 = sbr.rel (%p215) target = $region28
        $region27: #{tpu_custom_call.1} parent=11 // pred_region
          _
        $region28: #{tpu_custom_call.1} parent=11 // pred_fallthru
          _
      $region12: #{tpu_custom_call.1} parent=5 // pred_fallthru
        _
      %p218 = scmp.lt.s32.totalorder %s14, 2
      // Predicated region
      $region29: #{tpu_custom_call.1} parent=5 // pred_check
        %p219 = pneg %p218
      $region30: #{tpu_custom_call.1} parent=5 // pred_check_branch
        %221 = sbr.rel (%p219) target = $region32
      $region31: #{tpu_custom_call.1} parent=5 // pred_region
        // Predicated region
        $region33: #{tpu_custom_call.1} parent=31 // pred_check
          %p222 = pneg %p46
        $region34: #{tpu_custom_call.1} parent=31 // pred_check_branch
          %224 = sbr.rel (%p222) target = $region36
        $region35: #{tpu_custom_call.1} parent=31 // pred_region
          %p225 = scmp.lt.s32.totalorder %s21, 1
          %s226 = scalar_select %p225, %s21, 1
          %s227 = smul.addr %s226, 8
          %s228 = scalar_lea.vmem %s0, %s227
        $region36: #{tpu_custom_call.1} parent=31 // pred_fallthru
          _
      $region32: #{tpu_custom_call.1} parent=5 // pred_fallthru
        _
      %p229 = scmp.le.s32.totalorder 1, %s14
      %p230 = scmp.lt.s32.totalorder %s14, 3
      %p231 = pnand %p229, %p230
      %p232 = pneg %p231
      // Predicated region
      $region37: #{tpu_custom_call.1} parent=5 // pred_check
        _
      $region38: #{tpu_custom_call.1} parent=5 // pred_check_branch
        %234 = sbr.rel (%p231) target = $region40
      $region39: #{tpu_custom_call.1} parent=5 // pred_region
        %s235 = ssub.s32 %s14, 1
        %p236 = scmp.lt.s32.totalorder %s23, 1
        %s237 = scalar_select %p236, %s23, 1
        %s238 = smul.addr %s237, 8
        %s239 = scalar_lea.vmem %s0, %s238
        %p240 = pneg %p52
        %p241 = pneg %p49
        %p242 = scmp.lt.s32.totalorder %s24, 0
        %s243 = scalar_select %p242, %s24, 0
        %s244 = smul.addr %s243, 4
        %s245 = smul.addr %s244, 8
        %s246 = scalar_lea.vmem %s1, %s245
        %p247 = pneg %p78
        %p248 = pneg %p75
        %p249 = scmp.lt.s32.totalorder %s24, 0
        %s250 = scalar_select %p249, %s24, 0
        %s251 = scalar_lea.vmem %s2, %s250
        %p252 = pneg %p104
        %p253 = pneg %p101
        %s254 = smul.u32 8, %s24
        %p255 = scmp.lt.s32.totalorder %s254, 7
        %s256 = scalar_select %p255, %s254, 7
        %s257 = smul.addr %s256, 8
        %s258 = scalar_lea.vmem %s3, %s257
        %p259 = pneg %p130
        %p260 = pneg %p127
        %p261 = pneg %p151
        %p262 = pneg %p148
        %p263 = pneg %p177
        %p264 = pneg %p174
        %s265 = sand.u32 %s164, 1
        %s266 = scalar_lea.sflag [#allocation3], %s265
        %s267 = sand.u32 %s164, 1
        %s268 = smul.addr %s267, 8
        %s269 = scalar_lea.vmem [#allocation2], %s268
        %p270 = scmp.lt.s32.totalorder %s23, 1
        %s271 = scalar_select %p270, %s23, 1
        %s272 = smul.addr %s271, 8
        %s273 = scalar_lea.vmem %s0, %s272
        %p274 = scmp.lt.s32.totalorder %s24, 0
        %s275 = scalar_select %p274, %s24, 0
        %s276 = smul.addr %s275, 4
        %s277 = smul.addr %s276, 8
        %s278 = scalar_lea.vmem %s1, %s277
        %p279 = scmp.lt.s32.totalorder %s24, 0
        %s280 = scalar_select %p279, %s24, 0
        %s281 = scalar_lea.vmem %s2, %s280
        %s282 = smul.u32 8, %s24
        %p283 = scmp.lt.s32.totalorder %s282, 7
        %s284 = scalar_select %p283, %s282, 7
        %s285 = smul.addr %s284, 8
        %s286 = scalar_lea.vmem %s3, %s285
        %s287 = smul.u32 8, %s24
        %p288 = scmp.eq.s32.totalorder %s24, 0
        // Predicated region
        $region41: #{tpu_custom_call.1} parent=39 // pred_check
          %p289 = pneg %p288
        $region42: #{tpu_custom_call.1} parent=39 // pred_check_branch
          %291 = sbr.rel (%p289) target = $region44
        $region43: #{tpu_custom_call.1} parent=39 // pred_region
          %vm292 = vcmask 261120
          %293 = vst.msk [vmem:[%s269] sm:$0xff] %vm292, 0.0
        $region44: #{tpu_custom_call.1} parent=39 // pred_fallthru
          _
        %v294 = vld [vmem:[%s269] sm:$0xff]
        %v295 = vld [vmem:[%s273] sm:$0xff]
        %v296 = vld [vmem:[%s278] sm:$0xff]
        %v297 = vld [vmem:[%s278 + $0x8] sm:$0xff]
        %v298 = vld [vmem:[%s278 + $0x10] sm:$0xff]
        %v299 = vld [vmem:[%s278 + $0x18] sm:$0xff]
        %v300 = vld [vmem:[%s281] sm:$0x1]
        %v302 = vlaneseq
        %v303 = vshrl.u32 %v302, 7
        %v304 = vsub.s32 0, %v303
        %v305 = vrot.slane %v300, %v304
        %vm307 = vcmask 261120
        %v309 = vsel %vm307, %v295, 0
        %311 = vmatprep.subr.mxu0 0.0
        %312 = vmatpush1.msra.mxu0 0.0
        %313 = vmatprep.subr.mxu0 0.0
        %314 = vmatpush1.msra.mxu0 0.0
        %315 = vmatprep.subr.mxu0 0.0
        %316 = vmatpush1.msra.mxu0 0.0
        %317 = vmatprep.subr.mxu0 0.0
        %318 = vmatpush1.msra.mxu0 0.0
        %319 = vmatprep.subr.mxu0 0.0
        %320 = vmatpush1.msra.mxu0 0.0
        %321 = vmatprep.subr.mxu0 0.0
        %322 = vmatpush1.msra.mxu0 0.0
        %323 = vmatprep.subr.mxu0 0.0
        %324 = vmatpush1.msra.mxu0 0.0
        %325 = vmatprep.subr.mxu0 0.0
        %326 = vmatpush1.msra.mxu0 0.0
        %327 = vmatprep.subr.mxu0 0.0
        %328 = vmatpush1.msra.mxu0 0.0
        %329 = vmatprep.subr.mxu0 0.0
        %330 = vmatpush1.msra.mxu0 0.0
        %331 = vmatprep.subr.mxu0 0.0
        %332 = vmatpush1.msra.mxu0 0.0
        %333 = vmatprep.subr.mxu0 0.0
        %334 = vmatpush1.msra.mxu0 0.0
        %335 = vmatprep.subr.mxu0 0.0
        %336 = vmatpush1.msra.mxu0 %v299
        %337 = vmatprep.subr.mxu0 0.0
        %338 = vmatpush1.msra.mxu0 %v298
        %339 = vmatprep.subr.mxu0 0.0
        %340 = vmatpush1.msra.mxu0 %v297
        %341 = vmatprep.subr.mxu0 0.0
        %342 = vmatpush1.msra.mxu0 %v296
        %343 = vmatprep.subr.mxu0 0.0
        %344 = vmatpush2.msra.mxu0 0.0
        %345 = vmatprep.subr.mxu0 0.0
        %346 = vmatpush2.msra.mxu0 0.0
        %347 = vmatprep.subr.mxu0 0.0
        %348 = vmatpush2.msra.mxu0 0.0
        %349 = vmatprep.subr.mxu0 0.0
        %350 = vmatpush2.msra.mxu0 0.0
        %351 = vmatprep.subr.mxu0 0.0
        %352 = vmatpush2.msra.mxu0 0.0
        %353 = vmatprep.subr.mxu0 0.0
        %354 = vmatpush2.msra.mxu0 0.0
        %355 = vmatprep.subr.mxu0 0.0
        %356 = vmatpush2.msra.mxu0 0.0
        %357 = vmatprep.subr.mxu0 0.0
        %358 = vmatpush2.msra.mxu0 0.0
        %359 = vmatprep.subr.mxu0 0.0
        %360 = vmatpush2.msra.mxu0 0.0
        %361 = vmatprep.subr.mxu0 0.0
        %362 = vmatpush2.msra.mxu0 0.0
        %363 = vmatprep.subr.mxu0 0.0
        %364 = vmatpush2.msra.mxu0 0.0
        %365 = vmatprep.subr.mxu0 0.0
        %366 = vmatpush2.msra.mxu0 0.0
        %367 = vmatprep.subr.mxu0 0.0
        %368 = vmatpush2.msra.mxu0 0.0
        %369 = vmatprep.subr.mxu0 0.0
        %370 = vmatpush2.msra.mxu0 0.0
        %371 = vmatprep.subr.mxu0 0.0
        %372 = vmatpush2.msra.mxu0 0.0
        %373 = vmatprep.subr.mxu0 0.0
        %374 = vmatpush2.msra.mxu0 0.0
        %375 = vmatprep.mubr.f32.mxu0 0.0
        %376 = vmatmul.mubr.f32.gmra.mxu0 %v309
        %v377 = vpop.f32.mrf.mxu0
        %v378 = vadd.f32 %v305, %v377
        %v379 = vpop.f32.mrf.mxu0
        %380 = vdwg.mxu0
        %v381 = vmul.f32 %v378, 0.5
        %v382 = vmul.f32 %v378, 0.70710677
        %v383 = verf.f32.pop %v382
        %v384 = vadd.f32 %v383, 1.0
        %v385 = vmul.f32 %v381, %v384
        %v386 = vld [vmem:[%s286] sm:$0xff]
        %v387 = vld [vmem:[%s286 + $0x8] sm:$0xff]
        %v388 = vld [vmem:[%s286 + $0x10] sm:$0xff]
        %v389 = vld [vmem:[%s286 + $0x18] sm:$0xff]
        %v390 = vld [vmem:[%s286 + $0x20] sm:$0xff]
        %v391 = vld [vmem:[%s286 + $0x28] sm:$0xff]
        %v392 = vld [vmem:[%s286 + $0x30] sm:$0xff]
        %v393 = vld [vmem:[%s286 + $0x38] sm:$0xff]
        %vm394 = vcmask 523264
        %v396 = vsel %vm394, %v385, 0
        %398 = vmatprep.subr.mxu0 0.0
        %399 = vmatpush1.msra.mxu0 0.0
        %400 = vmatprep.subr.mxu0 0.0
        %401 = vmatpush1.msra.mxu0 0.0
        %402 = vmatprep.subr.mxu0 0.0
        %403 = vmatpush1.msra.mxu0 0.0
        %404 = vmatprep.subr.mxu0 0.0
        %405 = vmatpush1.msra.mxu0 0.0
        %406 = vmatprep.subr.mxu0 0.0
        %407 = vmatpush1.msra.mxu0 0.0
        %408 = vmatprep.subr.mxu0 0.0
        %409 = vmatpush1.msra.mxu0 0.0
        %410 = vmatprep.subr.mxu0 0.0
        %411 = vmatpush1.msra.mxu0 0.0
        %412 = vmatprep.subr.mxu0 0.0
        %413 = vmatpush1.msra.mxu0 0.0
        %414 = vmatprep.subr.mxu0 0.0
        %415 = vmatpush1.msra.mxu0 %v393
        %416 = vmatprep.subr.mxu0 0.0
        %417 = vmatpush1.msra.mxu0 %v392
        %418 = vmatprep.subr.mxu0 0.0
        %419 = vmatpush1.msra.mxu0 %v391
        %420 = vmatprep.subr.mxu0 0.0
        %421 = vmatpush1.msra.mxu0 %v390
        %422 = vmatprep.subr.mxu0 0.0
        %423 = vmatpush1.msra.mxu0 %v389
        %424 = vmatprep.subr.mxu0 0.0
        %425 = vmatpush1.msra.mxu0 %v388
        %426 = vmatprep.subr.mxu0 0.0
        %427 = vmatpush1.msra.mxu0 %v387
        %428 = vmatprep.subr.mxu0 0.0
        %429 = vmatpush1.msra.mxu0 %v386
        %430 = vmatprep.subr.mxu0 0.0
        %431 = vmatpush2.msra.mxu0 0.0
        %432 = vmatprep.subr.mxu0 0.0
        %433 = vmatpush2.msra.mxu0 0.0
        %434 = vmatprep.subr.mxu0 0.0
        %435 = vmatpush2.msra.mxu0 0.0
        %436 = vmatprep.subr.mxu0 0.0
        %437 = vmatpush2.msra.mxu0 0.0
        %438 = vmatprep.subr.mxu0 0.0
        %439 = vmatpush2.msra.mxu0 0.0
        %440 = vmatprep.subr.mxu0 0.0
        %441 = vmatpush2.msra.mxu0 0.0
        %442 = vmatprep.subr.mxu0 0.0
        %443 = vmatpush2.msra.mxu0 0.0
        %444 = vmatprep.subr.mxu0 0.0
        %445 = vmatpush2.msra.mxu0 0.0
        %446 = vmatprep.subr.mxu0 0.0
        %447 = vmatpush2.msra.mxu0 0.0
        %448 = vmatprep.subr.mxu0 0.0
        %449 = vmatpush2.msra.mxu0 0.0
        %450 = vmatprep.subr.mxu0 0.0
        %451 = vmatpush2.msra.mxu0 0.0
        %452 = vmatprep.subr.mxu0 0.0
        %453 = vmatpush2.msra.mxu0 0.0
        %454 = vmatprep.subr.mxu0 0.0
        %455 = vmatpush2.msra.mxu0 0.0
        %456 = vmatprep.subr.mxu0 0.0
        %457 = vmatpush2.msra.mxu0 0.0
        %458 = vmatprep.subr.mxu0 0.0
        %459 = vmatpush2.msra.mxu0 0.0
        %460 = vmatprep.subr.mxu0 0.0
        %461 = vmatpush2.msra.mxu0 0.0
        %462 = vmatprep.mubr.f32.mxu0 0.0
        %463 = vmatmul.mubr.f32.gmra.mxu0 %v396
        %v464 = vpop.f32.mrf.mxu0
        %v465 = vadd.f32 0.0, %v464
        %v466 = vpop.f32.mrf.mxu0
        %467 = vdwg.mxu0
        %v468 = vadd.f32 %v294, %v465
        %469 = vst.msk [vmem:[%s269] sm:$0xff] %vm307, %v468
        // Predicated region
        $region45: #{tpu_custom_call.1} parent=39 // pred_check
          %p470 = pneg %p288
        $region46: #{tpu_custom_call.1} parent=39 // pred_check_branch
          %472 = sbr.rel (%p470) target = $region48
        $region47: #{tpu_custom_call.1} parent=39 // pred_region
          %v473 = vld [vmem:[%s269] sm:$0xff]
          %v474 = vld [vmem:[%s4] sm:$0x1]
          %v476 = vlaneseq
          %v477 = vshrl.u32 %v476, 7
          %v478 = vsub.s32 0, %v477
          %v479 = vrot.slane %v474, %v478
          %v481 = vadd.f32 %v473, %v479
          %482 = vst.msk [vmem:[%s269] sm:$0xff] %vm307, %v481
        $region48: #{tpu_custom_call.1} parent=39 // pred_fallthru
          _
        %s483 = sand.u32 %s164, 1
        %s484 = scalar_lea.sflag [#allocation3], %s483
        %s485 = sand.u32 %s164, 1
        %s486 = smul.addr %s485, 8
        %s487 = scalar_lea.vmem [#allocation2], %s486
        // Predicated region
        $region49: #{tpu_custom_call.1} parent=39 // pred_check
          %p488 = pneg %p174
        $region50: #{tpu_custom_call.1} parent=39 // pred_check_branch
          %490 = sbr.rel (%p488) target = $region52
        $region51: #{tpu_custom_call.1} parent=39 // pred_region
          %s492 = ssub.s32 128, 128
          %493 = vsyncadd %s484, %s492
          %s494 = smul.addr %s23, 128
          %s495 = scalar_lea.hbm %s5, %s494
          %s497 = sshll.u32 %s487, 4
          %s498 = int_to_ptr.vmem [resolvable:$true] %s497
          %500 = dma.vmem_to_hbm [thread:$0]  %s498, 128, %s495, %s484
        $region52: #{tpu_custom_call.1} parent=39 // pred_fallthru
          _
      $region40: #{tpu_custom_call.1} parent=5 // pred_fallthru
        _
      %p501 = scmp.le.s32.totalorder 2, %s14
      // Predicated region
      $region53: #{tpu_custom_call.1} parent=5 // pred_check
        %p502 = pneg %p501
      $region54: #{tpu_custom_call.1} parent=5 // pred_check_branch
        %504 = sbr.rel (%p502) target = $region56
      $region55: #{tpu_custom_call.1} parent=5 // pred_region
        %s505 = ssub.s32 %s14, 2
        // Predicated region
        $region57: #{tpu_custom_call.1} parent=55 // pred_check
          %p506 = pneg %p180
        $region58: #{tpu_custom_call.1} parent=55 // pred_check_branch
          %508 = sbr.rel (%p506) target = $region60
        $region59: #{tpu_custom_call.1} parent=55 // pred_region
          %s509 = sand.u32 %s165, 1
          %s510 = scalar_lea.sflag [#allocation3], %s509
          %s511 = sand.u32 %s165, 1
          %s512 = smul.addr %s511, 8
          %s513 = scalar_lea.vmem [#allocation2], %s512
          %514 = dma.done %s510, 128
        $region60: #{tpu_custom_call.1} parent=55 // pred_fallthru
          _
      $region56: #{tpu_custom_call.1} parent=5 // pred_fallthru
        _
    $region6: #{tpu_custom_call.1} parent=1 // loop_footer
      %s18 = sadd.s32 1, %s14
    $region7: #{tpu_custom_call.1} parent=1 // loop_footer_branch
      %13 = sbr.rel target = $region3
    $region8: #{tpu_custom_call.1} parent=1 // loop_exit
      _
    %515 = vsyncpa [#allocation3], 1
    %s516 = scalar_lea.sflag [#allocation3], 1
    %517 = vsyncpa %s516, 1

</llo_original>
